<compile_context>
chip_gen: v7x
topology: tpu7x:2x2x1
jax: 0.10.0
libtpu: 0.0.40
codegen_flags: <defaults>
</compile_context>

<pallas_src>
import functools
import math

import jax
import jax.numpy as jnp
from jax.experimental import pallas as pl
from jax.experimental.pallas import tpu as pltpu


# ------------------------------ small helpers ------------------------------


def _round_up(x, m):
    return (x + m - 1) // m * m


def _pad2(a, rows, cols):
    pr, pc = rows - a.shape[0], cols - a.shape[1]
    if pr or pc:
        a = jnp.pad(a, ((0, pr), (0, pc)))
    return a


def _bf16_exp_default():
    """bf16 EUP exists on v6e/v7x only; keep f32 exp on v5e and older."""
    try:
        kind = jax.devices()[0].device_kind.lower()
    except Exception:
        return False
    return ("v6" in kind) or ("v7" in kind)


# ------------------------- tiled linear (y = x W^T + b) --------------------


def _linear_kernel(x_ref, w_ref, b_ref, o_ref, acc_ref):
    @pl.when(pl.program_id(2) == 0)
    def _():
        acc_ref[...] = jnp.zeros_like(acc_ref)

    # Contract dim 1 of x with dim 1 of w (w stored PyTorch-style as (O, K)):
    # MXU consumes the transposed RHS natively, no XLU transpose.
    acc_ref[...] += jax.lax.dot_general(
        x_ref[...], w_ref[...],
        dimension_numbers=(((1,), (1,)), ((), ())),
        preferred_element_type=jnp.float32)

    @pl.when(pl.program_id(2) == pl.num_programs(2) - 1)
    def _():
        # Bias add stays in the epilogue only (broadcast not CSE'd by JAX -- do
        # not move it into the accumulation loop when editing).
        o_ref[...] = (acc_ref[...] + b_ref[...].astype(jnp.float32)).astype(o_ref.dtype)


def pallas_linear(x, w, b, *, out_dtype=None, tm=512, tn=256, tk=1024):
    """x: (M, K), w: (O, K), b: (O,) -> (M, O).  MXU-fed in x.dtype, f32 accum."""
    M, K = x.shape
    O, K2 = w.shape
    assert K == K2
    out_dtype = out_dtype or x.dtype

    # (8, 128)-aligned tiles, shrunk for small problems.
    tm = min(tm, _round_up(M, 8))
    tn = min(tn, _round_up(O, 128))
    tk = min(tk, _round_up(K, 128))
    Mp, Op, Kp = _round_up(M, tm), _round_up(O, tn), _round_up(K, tk)

    xp = _pad2(x, Mp, Kp)
    wp = _pad2(w, Op, Kp)
    bp = _pad2(b.reshape(1, O), 1, Op)

    out = pl.pallas_call(
        _linear_kernel,
        out_shape=jax.ShapeDtypeStruct((Mp, Op), out_dtype),
        grid=(Mp // tm, Op // tn, Kp // tk),
        in_specs=[
            pl.BlockSpec((tm, tk), lambda i, j, k: (i, k)),
            pl.BlockSpec((tn, tk), lambda i, j, k: (j, k)),
            pl.BlockSpec((1, tn), lambda i, j, k: (0, j)),
        ],
        out_specs=pl.BlockSpec((tm, tn), lambda i, j, k: (i, j)),
        scratch_shapes=[pltpu.VMEM((tm, tn), jnp.float32)],
        compiler_params=pltpu.CompilerParams(
            dimension_semantics=("parallel", "parallel", "arbitrary"),
            vmem_limit_bytes=32 * 1024 * 1024),
    )(xp, wp, bp)
    return out[:M, :O]


# ------------------ attention (grid = batch x q-tiles x heads) -------------


def _mha_kernel(q_ref, k_ref, v_ref, o_ref, w_ref, w_acc_ref, *,
                n_keys, num_heads, bf16_exp):
    # q_ref : (tq, d)   this (batch, head)'s query-row tile (pre-scaled by 1/sqrt(d))
    # k_ref : (Lp, d)   this (batch, head)'s keys
    # v_ref : (Lp, d)   this (batch, head)'s values
    # o_ref : (tq, d)   per-head attention output tile
    # w_ref : (tq, Lp)  head-averaged attention weights tile (written at last head)
    # w_acc_ref: (tq, Lp) f32 scratch accumulator across the head grid axis
    h = pl.program_id(2)

    @pl.when(h == 0)
    def _():
        w_acc_ref[...] = jnp.zeros_like(w_acc_ref)

    q = q_ref[...]
    k = k_ref[...]
    v = v_ref[...]
    tq, Lk = q.shape[0], k.shape[0]

    # q @ k^T via dot_general (contract the d axes) -> MXU, no XLU transpose.
    s = jax.lax.dot_general(q, k, (((1,), (1,)), ((), ())),
                            preferred_element_type=jnp.float32)      # (tq, Lk)

    if Lk != n_keys:  # static: only emitted when the key axis was padded
        key_ids = jax.lax.broadcasted_iota(jnp.int32, (tq, Lk), 1)
        s = jnp.where(key_ids < n_keys, s, jnp.float32(-1e30))

    m = jnp.max(s, axis=-1, keepdims=True)
    sm = s - m
    if bf16_exp:  # v6e/v7x: bf16 EUP roughly doubles exp throughput
        p = jnp.exp(sm.astype(jnp.bfloat16)).astype(jnp.float32)
    else:         # v5e and older: EUP has no bf16 path
        p = jnp.exp(sm)
    denom = jnp.sum(p, axis=-1, keepdims=True)
    r = pl.reciprocal(denom, approx=False)   # exact -> weight rows sum to 1
    p = p * r                                # normalized softmax, f32

    # Per-head output: single lane-dense store of the (tq, d) tile.
    o_ref[...] = jax.lax.dot_general(
        p.astype(v.dtype), v, (((1,), (0,)), ((), ())),
        preferred_element_type=jnp.float32).astype(o_ref.dtype)

    w_acc_ref[...] += p                      # head sum; scaled once at the end

    @pl.when(h == num_heads - 1)
    def _():
        w_ref[...] = (w_acc_ref[...] * (1.0 / num_heads)).astype(w_ref.dtype)


def pallas_attention(q, k, v, *, tq=256, out_dtype=None,
                     weights_dtype=jnp.float32, bf16_exp=False):
    """q, k, v: (N, H, L, d) -> (out (N, H, L, d), head-avg weights (N, L, L))."""
    N, H, L, d = q.shape
    out_dtype = out_dtype or q.dtype

    tq = min(tq, _round_up(L, 8))
    Lp = _round_up(L, tq)
    if Lp != L:
        pad = ((0, 0), (0, 0), (0, Lp - L), (0, 0))
        q, k, v = jnp.pad(q, pad), jnp.pad(k, pad), jnp.pad(v, pad)

    kernel = functools.partial(_mha_kernel, n_keys=L, num_heads=H,
                               bf16_exp=bf16_exp)

    o, w = pl.pallas_call(
        kernel,
        out_shape=(
            jax.ShapeDtypeStruct((N, H, Lp, d), out_dtype),
            jax.ShapeDtypeStruct((N, Lp, Lp), weights_dtype),
        ),
        grid=(N, Lp // tq, H),
        in_specs=[
            # query-row tile of this (batch, head)
            pl.BlockSpec((None, None, tq, d), lambda n, qi, h: (n, h, qi, 0)),
            # full K / V for this (batch, head): only 2*Lp*d bytes resident
            pl.BlockSpec((None, None, Lp, d), lambda n, qi, h: (n, h, 0, 0)),
            pl.BlockSpec((None, None, Lp, d), lambda n, qi, h: (n, h, 0, 0)),
        ],
        out_specs=(
            pl.BlockSpec((None, None, tq, d), lambda n, qi, h: (n, h, qi, 0)),
            # same block across the head axis -> resident accumulator target
            pl.BlockSpec((None, tq, Lp), lambda n, qi, h: (n, qi, 0)),
        ),
        scratch_shapes=[pltpu.VMEM((tq, Lp), jnp.float32)],
        compiler_params=pltpu.CompilerParams(
            dimension_semantics=("parallel", "parallel", "arbitrary"),
            vmem_limit_bytes=48 * 1024 * 1024),
    )(q, k, v)
    return o[:, :, :L, :], w[:, :L, :L]


# ------------------------------- Module glue -------------------------------


def init_params(key, embed_dim):
    """Deterministic parameter init (shapes match nn.MultiheadAttention)."""
    k1, k2 = jax.random.split(key)
    E = embed_dim
    lim_in = math.sqrt(6.0 / (E + 3 * E))
    lim_out = math.sqrt(6.0 / (E + E))
    return {
        "in_proj_weight": jax.random.uniform(k1, (3 * E, E), jnp.float32,
                                             -lim_in, lim_in),
        "in_proj_bias": jnp.zeros((3 * E,), jnp.float32),
        "out_proj_weight": jax.random.uniform(k2, (E, E), jnp.float32,
                                              -lim_out, lim_out),
        "out_proj_bias": jnp.zeros((E,), jnp.float32),
    }


def multihead_self_attention(x, params, num_heads, *, bf16_exp=None):
    """x: (L, N, E) -> (attn_output (L, N, E), attn_weights (N, L, L))."""
    L, N, E = x.shape
    assert E % num_heads == 0
    d = E // num_heads
    scale = 1.0 / math.sqrt(d)
    cdt = jnp.bfloat16  # MXU feed dtype; accumulation / softmax stay f32
    if bf16_exp is None:
        bf16_exp = _bf16_exp_default()

    # Fold the 1/sqrt(d) scale into the Q rows of the in-projection.
    w_in = params["in_proj_weight"]
    b_in = params["in_proj_bias"]
    row_scale = jnp.concatenate([jnp.full((E,), scale, jnp.float32),
                                 jnp.ones((2 * E,), jnp.float32)])
    w_in_s = (w_in * row_scale[:, None]).astype(cdt)
    b_in_s = (b_in * row_scale).astype(jnp.float32)

    # Batch-major activations; everything below the projections is layout
    # plumbing done by XLA outside the kernels (O(N*L*E) traffic only).
    xb = x.transpose(1, 0, 2).reshape(N * L, E).astype(cdt)
    qkv = pallas_linear(xb, w_in_s, b_in_s, out_dtype=cdt)          # (N*L, 3E)

    # Split Q/K/V and put the head axis next to batch so each attention block
    # is a lane-dense slab whose minor dim is the full head_dim (no sub-tile
    # head slicing inside the kernel).
    qkv = qkv.reshape(N, L, 3, num_heads, d).transpose(2, 0, 3, 1, 4)
    q, k, v = qkv[0], qkv[1], qkv[2]                                 # (N, H, L, d)

    attn_out, attn_w = pallas_attention(q, k, v, out_dtype=cdt, bf16_exp=bf16_exp)

    # (N, H, L, d) -> (N*L, E) for the output projection.
    attn_out = attn_out.transpose(0, 2, 1, 3).reshape(N * L, E)
    out = pallas_linear(attn_out,
                        params["out_proj_weight"].astype(cdt),
                        params["out_proj_bias"].astype(jnp.float32),
                        out_dtype=jnp.float32)
    out = out.reshape(N, L, E).transpose(1, 0, 2)                    # (L, N, E)

    # attn_w is head-averaged inside the kernel -> (N, L, L), f32.
    return out, attn_w


# Pure-JAX f32 reference for correctness checking.
def _reference(x, params, num_heads):
    L, N, E = x.shape
    d = E // num_heads
    qkv = x.reshape(L * N, E) @ params["in_proj_weight"].T + params["in_proj_bias"]
    q, k, v = jnp.split(qkv, 3, axis=-1)

    def to_heads(t):
        return t.reshape(L, N, num_heads, d).transpose(1, 2, 0, 3)

    q, k, v = to_heads(q), to_heads(k), to_heads(v)
    s = jnp.einsum("nhld,nhmd->nhlm", q, k) / math.sqrt(d)
    p = jax.nn.softmax(s, axis=-1)
    o = jnp.einsum("nhlm,nhmd->nhld", p, v)
    o = o.transpose(2, 0, 1, 3).reshape(L * N, E)
    o = o @ params["out_proj_weight"].T + params["out_proj_bias"]
    return o.reshape(L, N, E), jnp.mean(p, axis=1)


if __name__ == "__main__":
    base_key = jax.random.PRNGKey(0)

    def run_case(L, N, E, H, case_id):
        key = jax.random.fold_in(base_key, case_id)
        kx, kp = jax.random.split(key)
        x = jax.random.normal(kx, (L, N, E), jnp.float32)
        params = init_params(kp, E)

        out, weights = jax.jit(
            functools.partial(multihead_self_attention, num_heads=H)
        )(x, params)
        out = jax.block_until_ready(out)
        weights = jax.block_until_ready(weights)

        ref_out, ref_w = _reference(x, params, H)
        assert out.shape == (L, N, E) and weights.shape == (N, L, L)
        # bf16 MXU feed -> slightly looser tolerances than pure f32.
        assert jnp.allclose(out, ref_out, atol=5e-2, rtol=5e-2)
        assert jnp.allclose(weights, ref_w, atol=3e-2, rtol=3e-2)

    # Aligned single-tile case and a padded/masked case (L not a multiple of 8,
    # E not a multiple of 128) so the mask + padded-projection paths are covered.
    run_case(L=8, N=2, E=32, H=4, case_id=0)
    run_case(L=10, N=3, E=48, H=3, case_id=1)

    print("KERNEL_OK")
</pallas_src>

<mosaic_0001>
module attributes {stable_mosaic.version = 11 : i64} {
  func.func @_linear_kernel(%arg0: i32, %arg1: i32, %arg2: i32, %arg3: memref<16x128xbf16, #tpu.memory_space<vmem>>, %arg4: memref<128x128xbf16, #tpu.memory_space<vmem>>, %arg5: memref<1x128xf32, #tpu.memory_space<vmem>>, %arg6: memref<16x128xbf16, #tpu.memory_space<vmem>>, %arg7: memref<16x128xf32, #tpu.memory_space<vmem>>) attributes {dimension_semantics = [#tpu.dimension_semantics<parallel>, #tpu.dimension_semantics<parallel>, #tpu.dimension_semantics<arbitrary>], iteration_bounds = array<i64: 1, 1, 1>, scalar_prefetch = 0 : i64, scratch_operands = 1 : i64, tpu.core_type = #tpu.core_type<tc>, window_params = [{transform_indices = @transform_0, window_bounds = array<i64: 16, 128>}, {transform_indices = @transform_1, window_bounds = array<i64: 128, 128>}, {transform_indices = @transform_2, window_bounds = array<i64: 1, 128>}, {transform_indices = @transform_3, window_bounds = array<i64: 16, 128>}]} {
    %c0_i32 = arith.constant 0 : i32
    %0 = arith.cmpi eq, %arg2, %c0_i32 : i32
    %1 = arith.extui %0 : i1 to i32
    %c0_i32_0 = arith.constant 0 : i32
    %2 = arith.cmpi ne, %1, %c0_i32_0 : i32
    scf.if %2 {
      %cst_10 = arith.constant 0.000000e+00 : f32
      %12 = vector.broadcast %cst_10 : f32 to vector<16x128xf32>
      %c0_11 = arith.constant 0 : index
      %c0_12 = arith.constant 0 : index
      %13 = vector.load %arg7[%c0_11, %c0_12] : memref<16x128xf32, #tpu.memory_space<vmem>>, vector<16x128xf32>
      tpu.vector_store %arg7[%c0_11, %c0_12], %12 {strides = array<i32>} : memref<16x128xf32, #tpu.memory_space<vmem>>, vector<16x128xf32>,
    } else {
    }
    %c0 = arith.constant 0 : index
    %c0_1 = arith.constant 0 : index
    %3 = vector.load %arg7[%c0, %c0_1] : memref<16x128xf32, #tpu.memory_space<vmem>>, vector<16x128xf32>
    %c0_2 = arith.constant 0 : index
    %c0_3 = arith.constant 0 : index
    %4 = vector.load %arg3[%c0_2, %c0_3] : memref<16x128xbf16, #tpu.memory_space<vmem>>, vector<16x128xbf16>
    %c0_4 = arith.constant 0 : index
    %c0_5 = arith.constant 0 : index
    %5 = vector.load %arg4[%c0_4, %c0_5] : memref<128x128xbf16, #tpu.memory_space<vmem>>, vector<128x128xbf16>
    %cst = arith.constant dense<0.000000e+00> : vector<16x128xf32>
    %6 = tpu.matmul %4, %5, %cst {dimension_numbers = #tpu.dot_dimension_numbers<[1], [1], [0], [0], [0, 0, 1, 0], [], []>} : vector<16x128xbf16>, vector<128x128xbf16>, vector<16x128xf32> -> vector<16x128xf32>
    %7 = arith.addf %3, %6 : vector<16x128xf32>
    %c0_6 = arith.constant 0 : index
    %c0_7 = arith.constant 0 : index
    %8 = vector.load %arg7[%c0_6, %c0_7] : memref<16x128xf32, #tpu.memory_space<vmem>>, vector<16x128xf32>
    tpu.vector_store %arg7[%c0_6, %c0_7], %7 {strides = array<i32>} : memref<16x128xf32, #tpu.memory_space<vmem>>, vector<16x128xf32>,
    %c0_i32_8 = arith.constant 0 : i32
    %9 = arith.cmpi eq, %arg2, %c0_i32_8 : i32
    %10 = arith.extui %9 : i1 to i32
    %c0_i32_9 = arith.constant 0 : i32
    %11 = arith.cmpi ne, %10, %c0_i32_9 : i32
    scf.if %11 {
      %c0_10 = arith.constant 0 : index
      %c0_11 = arith.constant 0 : index
      %12 = vector.load %arg7[%c0_10, %c0_11] : memref<16x128xf32, #tpu.memory_space<vmem>>, vector<16x128xf32>
      %c0_12 = arith.constant 0 : index
      %c0_13 = arith.constant 0 : index
      %13 = vector.load %arg5[%c0_12, %c0_13] : memref<1x128xf32, #tpu.memory_space<vmem>>, vector<1x128xf32>
      %14 = vector.broadcast %13 : vector<1x128xf32> to vector<16x128xf32>
      %15 = arith.addf %12, %14 : vector<16x128xf32>
      %16 = arith.truncf %15 : vector<16x128xf32> to vector<16x128xbf16>
      %c0_14 = arith.constant 0 : index
      %c0_15 = arith.constant 0 : index
      %17 = vector.load %arg6[%c0_14, %c0_15] : memref<16x128xbf16, #tpu.memory_space<vmem>>, vector<16x128xbf16>
      tpu.vector_store %arg6[%c0_14, %c0_15], %16 {strides = array<i32>} : memref<16x128xbf16, #tpu.memory_space<vmem>>, vector<16x128xbf16>,
    } else {
    }
    return
  }
  func.func @transform_0(%arg0: i32, %arg1: i32, %arg2: i32) -> (i32, i32) {
    %c0_i32 = arith.constant 0 : i32
    return %arg0, %arg2 : i32, i32
  }
  func.func @transform_1(%arg0: i32, %arg1: i32, %arg2: i32) -> (i32, i32) {
    %c0_i32 = arith.constant 0 : i32
    return %arg1, %arg2 : i32, i32
  }
  func.func @transform_2(%arg0: i32, %arg1: i32, %arg2: i32) -> (i32, i32) {
    %c0_i32 = arith.constant 0 : i32
    %c0_i32_0 = arith.constant 0 : i32
    return %c0_i32, %arg1 : i32, i32
  }
  func.func @transform_3(%arg0: i32, %arg1: i32, %arg2: i32) -> (i32, i32) {
    %c0_i32 = arith.constant 0 : i32
    return %arg0, %arg1 : i32, i32
  }
}

module attributes {stable_mosaic.version = 11 : i64} {
  func.func @_mha_kernel(%arg0: i32, %arg1: i32, %arg2: i32, %arg3: memref<1x1x8x8xbf16, #tpu.memory_space<vmem>>, %arg4: memref<1x1x8x8xbf16, #tpu.memory_space<vmem>>, %arg5: memref<1x1x8x8xbf16, #tpu.memory_space<vmem>>, %arg6: memref<1x1x8x8xbf16, #tpu.memory_space<vmem>>, %arg7: memref<1x8x8xf32, #tpu.memory_space<vmem>>, %arg8: memref<8x8xf32, #tpu.memory_space<vmem>>) attributes {dimension_semantics = [#tpu.dimension_semantics<parallel>, #tpu.dimension_semantics<parallel>, #tpu.dimension_semantics<arbitrary>], iteration_bounds = array<i64: 2, 1, 4>, scalar_prefetch = 0 : i64, scratch_operands = 1 : i64, tpu.core_type = #tpu.core_type<tc>, window_params = [{transform_indices = @transform_0, window_bounds = array<i64: 1, 1, 8, 8>}, {transform_indices = @transform_1, window_bounds = array<i64: 1, 1, 8, 8>}, {transform_indices = @transform_2, window_bounds = array<i64: 1, 1, 8, 8>}, {transform_indices = @transform_3, window_bounds = array<i64: 1, 1, 8, 8>}, {transform_indices = @transform_4, window_bounds = array<i64: 1, 8, 8>}]} {
    %c0_i32 = arith.constant 0 : i32
    %0 = arith.cmpi eq, %arg2, %c0_i32 : i32
    %1 = arith.extui %0 : i1 to i32
    %c0_i32_0 = arith.constant 0 : i32
    %2 = arith.cmpi ne, %1, %c0_i32_0 : i32
    scf.if %2 {
      %cst_24 = arith.constant 0.000000e+00 : f32
      %32 = vector.broadcast %cst_24 : f32 to vector<8x8xf32>
      %c0_25 = arith.constant 0 : index
      %c0_26 = arith.constant 0 : index
      %33 = vector.load %arg8[%c0_25, %c0_26] : memref<8x8xf32, #tpu.memory_space<vmem>>, vector<8x8xf32>
      tpu.vector_store %arg8[%c0_25, %c0_26], %32 {strides = array<i32>} : memref<8x8xf32, #tpu.memory_space<vmem>>, vector<8x8xf32>,
    } else {
    }
    %c0 = arith.constant 0 : index
    %c0_1 = arith.constant 0 : index
    %c0_2 = arith.constant 0 : index
    %c0_3 = arith.constant 0 : index
    %3 = vector.load %arg3[%c0, %c0_1, %c0_2, %c0_3] : memref<1x1x8x8xbf16, #tpu.memory_space<vmem>>, vector<1x1x8x8xbf16>
    %4 = vector.shape_cast %3 : vector<1x1x8x8xbf16> to vector<8x8xbf16>
    %c0_4 = arith.constant 0 : index
    %c0_5 = arith.constant 0 : index
    %c0_6 = arith.constant 0 : index
    %c0_7 = arith.constant 0 : index
    %5 = vector.load %arg4[%c0_4, %c0_5, %c0_6, %c0_7] : memref<1x1x8x8xbf16, #tpu.memory_space<vmem>>, vector<1x1x8x8xbf16>
    %6 = vector.shape_cast %5 : vector<1x1x8x8xbf16> to vector<8x8xbf16>
    %c0_8 = arith.constant 0 : index
    %c0_9 = arith.constant 0 : index
    %c0_10 = arith.constant 0 : index
    %c0_11 = arith.constant 0 : index
    %7 = vector.load %arg5[%c0_8, %c0_9, %c0_10, %c0_11] : memref<1x1x8x8xbf16, #tpu.memory_space<vmem>>, vector<1x1x8x8xbf16>
    %8 = vector.shape_cast %7 : vector<1x1x8x8xbf16> to vector<8x8xbf16>
    %cst = arith.constant dense<0.000000e+00> : vector<8x8xf32>
    %9 = tpu.matmul %4, %6, %cst {dimension_numbers = #tpu.dot_dimension_numbers<[1], [1], [0], [0], [0, 0, 1, 0], [], []>} : vector<8x8xbf16>, vector<8x8xbf16>, vector<8x8xf32> -> vector<8x8xf32>
    %cst_12 = arith.constant dense<0xFF800000> : vector<8xf32>
    %10 = vector.multi_reduction <maximumf>, %9, %cst_12 [1] : vector<8x8xf32> to vector<8xf32>
    %11 = vector.shape_cast %10 : vector<8xf32> to vector<8x1xf32>
    %12 = vector.broadcast %11 : vector<8x1xf32> to vector<8x8xf32>
    %13 = arith.subf %9, %12 : vector<8x8xf32>
    %14 = math.exp %13 : vector<8x8xf32>
    %cst_13 = arith.constant dense<0.000000e+00> : vector<8xf32>
    %15 = vector.multi_reduction <add>, %14, %cst_13 [1] : vector<8x8xf32> to vector<8xf32>
    %16 = vector.shape_cast %15 : vector<8xf32> to vector<8x1xf32>
    %17 = tpu.reciprocal %16 : vector<8x1xf32> -> vector<8x1xf32>
    %18 = vector.broadcast %17 : vector<8x1xf32> to vector<8x8xf32>
    %19 = arith.mulf %14, %18 : vector<8x8xf32>
    %20 = arith.truncf %19 : vector<8x8xf32> to vector<8x8xbf16>
    %cst_14 = arith.constant dense<0.000000e+00> : vector<8x8xf32>
    %21 = tpu.matmul %20, %8, %cst_14 {dimension_numbers = #tpu.dot_dimension_numbers<[1], [0], [0], [1], [0, 0, 1, 1], [], []>} : vector<8x8xbf16>, vector<8x8xbf16>, vector<8x8xf32> -> vector<8x8xf32>
    %22 = arith.truncf %21 : vector<8x8xf32> to vector<8x8xbf16>
    %c0_15 = arith.constant 0 : index
    %c0_16 = arith.constant 0 : index
    %c0_17 = arith.constant 0 : index
    %c0_18 = arith.constant 0 : index
    %23 = vector.load %arg6[%c0_15, %c0_16, %c0_17, %c0_18] : memref<1x1x8x8xbf16, #tpu.memory_space<vmem>>, vector<1x1x8x8xbf16>
    %24 = vector.shape_cast %23 : vector<1x1x8x8xbf16> to vector<8x8xbf16>
    %25 = vector.shape_cast %22 : vector<8x8xbf16> to vector<1x1x8x8xbf16>
    tpu.vector_store %arg6[%c0_15, %c0_16, %c0_17, %c0_18], %25 {strides = array<i32>} : memref<1x1x8x8xbf16, #tpu.memory_space<vmem>>, vector<1x1x8x8xbf16>,
    %c0_19 = arith.constant 0 : index
    %c0_20 = arith.constant 0 : index
    %26 = vector.load %arg8[%c0_19, %c0_20] : memref<8x8xf32, #tpu.memory_space<vmem>>, vector<8x8xf32>
    %27 = arith.addf %26, %19 : vector<8x8xf32>
    %c0_21 = arith.constant 0 : index
    %c0_22 = arith.constant 0 : index
    %28 = vector.load %arg8[%c0_21, %c0_22] : memref<8x8xf32, #tpu.memory_space<vmem>>, vector<8x8xf32>
    tpu.vector_store %arg8[%c0_21, %c0_22], %27 {strides = array<i32>} : memref<8x8xf32, #tpu.memory_space<vmem>>, vector<8x8xf32>,
    %c3_i32 = arith.constant 3 : i32
    %29 = arith.cmpi eq, %arg2, %c3_i32 : i32
    %30 = arith.extui %29 : i1 to i32
    %c0_i32_23 = arith.constant 0 : i32
    %31 = arith.cmpi ne, %30, %c0_i32_23 : i32
    scf.if %31 {
      %c0_24 = arith.constant 0 : index
      %c0_25 = arith.constant 0 : index
      %32 = vector.load %arg8[%c0_24, %c0_25] : memref<8x8xf32, #tpu.memory_space<vmem>>, vector<8x8xf32>
      %cst_26 = arith.constant 2.500000e-01 : f32
      %33 = vector.broadcast %cst_26 : f32 to vector<8x8xf32>
      %34 = arith.mulf %32, %33 : vector<8x8xf32>
      %c0_27 = arith.constant 0 : index
      %c0_28 = arith.constant 0 : index
      %c0_29 = arith.constant 0 : index
      %35 = vector.load %arg7[%c0_27, %c0_28, %c0_29] : memref<1x8x8xf32, #tpu.memory_space<vmem>>, vector<1x8x8xf32>
      %36 = vector.shape_cast %35 : vector<1x8x8xf32> to vector<8x8xf32>
      %37 = vector.shape_cast %34 : vector<8x8xf32> to vector<1x8x8xf32>
      tpu.vector_store %arg7[%c0_27, %c0_28, %c0_29], %37 {strides = array<i32>} : memref<1x8x8xf32, #tpu.memory_space<vmem>>, vector<1x8x8xf32>,
    } else {
    }
    return
  }
  func.func @transform_0(%arg0: i32, %arg1: i32, %arg2: i32) -> (i32, i32, i32, i32) {
    %c0_i32 = arith.constant 0 : i32
    %c0_i32_0 = arith.constant 0 : i32
    return %arg0, %arg2, %arg1, %c0_i32 : i32, i32, i32, i32
  }
  func.func @transform_1(%arg0: i32, %arg1: i32, %arg2: i32) -> (i32, i32, i32, i32) {
    %c0_i32 = arith.constant 0 : i32
    %c0_i32_0 = arith.constant 0 : i32
    %c0_i32_1 = arith.constant 0 : i32
    return %arg0, %arg2, %c0_i32, %c0_i32_0 : i32, i32, i32, i32
  }
  func.func @transform_2(%arg0: i32, %arg1: i32, %arg2: i32) -> (i32, i32, i32, i32) {
    %c0_i32 = arith.constant 0 : i32
    %c0_i32_0 = arith.constant 0 : i32
    %c0_i32_1 = arith.constant 0 : i32
    return %arg0, %arg2, %c0_i32, %c0_i32_0 : i32, i32, i32, i32
  }
  func.func @transform_3(%arg0: i32, %arg1: i32, %arg2: i32) -> (i32, i32, i32, i32) {
    %c0_i32 = arith.constant 0 : i32
    %c0_i32_0 = arith.constant 0 : i32
    return %arg0, %arg2, %arg1, %c0_i32 : i32, i32, i32, i32
  }
  func.func @transform_4(%arg0: i32, %arg1: i32, %arg2: i32) -> (i32, i32, i32) {
    %c0_i32 = arith.constant 0 : i32
    %c0_i32_0 = arith.constant 0 : i32
    return %arg0, %arg1, %c0_i32 : i32, i32, i32
  }
}

module attributes {stable_mosaic.version = 11 : i64} {
  func.func @_linear_kernel(%arg0: i32, %arg1: i32, %arg2: i32, %arg3: memref<16x128xbf16, #tpu.memory_space<vmem>>, %arg4: memref<128x128xbf16, #tpu.memory_space<vmem>>, %arg5: memref<1x128xf32, #tpu.memory_space<vmem>>, %arg6: memref<16x128xf32, #tpu.memory_space<vmem>>, %arg7: memref<16x128xf32, #tpu.memory_space<vmem>>) attributes {dimension_semantics = [#tpu.dimension_semantics<parallel>, #tpu.dimension_semantics<parallel>, #tpu.dimension_semantics<arbitrary>], iteration_bounds = array<i64: 1, 1, 1>, scalar_prefetch = 0 : i64, scratch_operands = 1 : i64, tpu.core_type = #tpu.core_type<tc>, window_params = [{transform_indices = @transform_0, window_bounds = array<i64: 16, 128>}, {transform_indices = @transform_1, window_bounds = array<i64: 128, 128>}, {transform_indices = @transform_2, window_bounds = array<i64: 1, 128>}, {transform_indices = @transform_3, window_bounds = array<i64: 16, 128>}]} {
    %c0_i32 = arith.constant 0 : i32
    %0 = arith.cmpi eq, %arg2, %c0_i32 : i32
    %1 = arith.extui %0 : i1 to i32
    %c0_i32_0 = arith.constant 0 : i32
    %2 = arith.cmpi ne, %1, %c0_i32_0 : i32
    scf.if %2 {
      %cst_10 = arith.constant 0.000000e+00 : f32
      %12 = vector.broadcast %cst_10 : f32 to vector<16x128xf32>
      %c0_11 = arith.constant 0 : index
      %c0_12 = arith.constant 0 : index
      %13 = vector.load %arg7[%c0_11, %c0_12] : memref<16x128xf32, #tpu.memory_space<vmem>>, vector<16x128xf32>
      tpu.vector_store %arg7[%c0_11, %c0_12], %12 {strides = array<i32>} : memref<16x128xf32, #tpu.memory_space<vmem>>, vector<16x128xf32>,
    } else {
    }
    %c0 = arith.constant 0 : index
    %c0_1 = arith.constant 0 : index
    %3 = vector.load %arg7[%c0, %c0_1] : memref<16x128xf32, #tpu.memory_space<vmem>>, vector<16x128xf32>
    %c0_2 = arith.constant 0 : index
    %c0_3 = arith.constant 0 : index
    %4 = vector.load %arg3[%c0_2, %c0_3] : memref<16x128xbf16, #tpu.memory_space<vmem>>, vector<16x128xbf16>
    %c0_4 = arith.constant 0 : index
    %c0_5 = arith.constant 0 : index
    %5 = vector.load %arg4[%c0_4, %c0_5] : memref<128x128xbf16, #tpu.memory_space<vmem>>, vector<128x128xbf16>
    %cst = arith.constant dense<0.000000e+00> : vector<16x128xf32>
    %6 = tpu.matmul %4, %5, %cst {dimension_numbers = #tpu.dot_dimension_numbers<[1], [1], [0], [0], [0, 0, 1, 0], [], []>} : vector<16x128xbf16>, vector<128x128xbf16>, vector<16x128xf32> -> vector<16x128xf32>
    %7 = arith.addf %3, %6 : vector<16x128xf32>
    %c0_6 = arith.constant 0 : index
    %c0_7 = arith.constant 0 : index
    %8 = vector.load %arg7[%c0_6, %c0_7] : memref<16x128xf32, #tpu.memory_space<vmem>>, vector<16x128xf32>
    tpu.vector_store %arg7[%c0_6, %c0_7], %7 {strides = array<i32>} : memref<16x128xf32, #tpu.memory_space<vmem>>, vector<16x128xf32>,
    %c0_i32_8 = arith.constant 0 : i32
    %9 = arith.cmpi eq, %arg2, %c0_i32_8 : i32
    %10 = arith.extui %9 : i1 to i32
    %c0_i32_9 = arith.constant 0 : i32
    %11 = arith.cmpi ne, %10, %c0_i32_9 : i32
    scf.if %11 {
      %c0_10 = arith.constant 0 : index
      %c0_11 = arith.constant 0 : index
      %12 = vector.load %arg7[%c0_10, %c0_11] : memref<16x128xf32, #tpu.memory_space<vmem>>, vector<16x128xf32>
      %c0_12 = arith.constant 0 : index
      %c0_13 = arith.constant 0 : index
      %13 = vector.load %arg5[%c0_12, %c0_13] : memref<1x128xf32, #tpu.memory_space<vmem>>, vector<1x128xf32>
      %14 = vector.broadcast %13 : vector<1x128xf32> to vector<16x128xf32>
      %15 = arith.addf %12, %14 : vector<16x128xf32>
      %c0_14 = arith.constant 0 : index
      %c0_15 = arith.constant 0 : index
      %16 = vector.load %arg6[%c0_14, %c0_15] : memref<16x128xf32, #tpu.memory_space<vmem>>, vector<16x128xf32>
      tpu.vector_store %arg6[%c0_14, %c0_15], %15 {strides = array<i32>} : memref<16x128xf32, #tpu.memory_space<vmem>>, vector<16x128xf32>,
    } else {
    }
    return
  }
  func.func @transform_0(%arg0: i32, %arg1: i32, %arg2: i32) -> (i32, i32) {
    %c0_i32 = arith.constant 0 : i32
    return %arg0, %arg2 : i32, i32
  }
  func.func @transform_1(%arg0: i32, %arg1: i32, %arg2: i32) -> (i32, i32) {
    %c0_i32 = arith.constant 0 : i32
    return %arg1, %arg2 : i32, i32
  }
  func.func @transform_2(%arg0: i32, %arg1: i32, %arg2: i32) -> (i32, i32) {
    %c0_i32 = arith.constant 0 : i32
    %c0_i32_0 = arith.constant 0 : i32
    return %c0_i32, %arg1 : i32, i32
  }
  func.func @transform_3(%arg0: i32, %arg1: i32, %arg2: i32) -> (i32, i32) {
    %c0_i32 = arith.constant 0 : i32
    return %arg0, %arg1 : i32, i32
  }
}

</mosaic_0001>

<llo_original>
// kernel: multihead_self_attention.4
$region0: #{multihead_self_attention.4}
  #allocation0 [shape = 'u32[]', space=smem, size = 0x4, offset = 0x4, fixed_abs, tag = 'smem constant byte address 0x4 - core index']
  #allocation1 [shape = 'u32[144,128]{1,0:T(1,128)}', space=vmem, size = 0x12000, scoped, tag = 'internal scratch']
  #allocation2 [shape = 'f32[8,8]{1,0:T(8,128)}', space=vmem, size = 0x1000, scoped, tag = 'scratch operand']
  %s0 = inlined_call_operand.vmem [shape: bf16[2,4,8,8], index: 0, kind: input, shape index: {}]
  %s1 = inlined_call_operand.vmem [shape: bf16[2,4,8,8], index: 1, kind: input, shape index: {}]
  %s2 = inlined_call_operand.vmem [shape: bf16[2,4,8,8], index: 2, kind: input, shape index: {}]
  %s3 = inlined_call_operand.vmem [shape: bf16[2,4,8,8], index: 3, kind: output, shape index: {0}]
  %s4 = inlined_call_operand.hbm [shape: f32[2,8,8], index: 4, kind: output, shape index: {1}]
  %5 = xla_tuple %s3, %s4
  %s6 = sld [smem:[#allocation0]]
  $region61: #{multihead_self_attention.4} parent=0
    _
  %s8 = ssub.s32 1, %s6
  %s9 = scalar_select 0, %s8, %s6
  $region1: #{multihead_self_attention.4} parent=0
    #allocation3 [shape = 'u8[8192]{0}', space=vmem, size = 0x2000, scoped, tag = 'output window, operand 1']
    #allocation4 [shape = 's32[2]{0}', space=sflag, size = 0x8, scoped, tag = 'scoped memory for multihead_self_attention.4']
    %10 = vsyncpa [#allocation4], 0
    %s11 = scalar_lea.sflag [#allocation4], 1
    %12 = vsyncpa %s11, 0
    loop: start=0, step=1, limit=10
    $region2: #{multihead_self_attention.4} parent=1 // loop_pre_header
      _
    $region3: #{multihead_self_attention.4} parent=1 // loop_header
      %s14 = sphi 0, %s18
      %p15 = scmp.ge.s32.totalorder %s14, 10
      %s21 = sphi 0, %s40
      %s22 = sphi 0, %s36
      %s23 = sphi 0, %s32
      %s24 = sphi 0, %s21
      %s25 = sphi 0, %s22
      %s26 = sphi 0, %s23
      %s27 = sphi 0, %s24
      %s28 = sphi 0, %s25
      %s29 = sphi 0, %s26
      %s47 = sphi 0, %s49
      %s50 = sphi 0, %s47
      %s51 = sphi 0, %s50
      %s67 = sphi 0, %s51
      %s75 = sphi 0, %s77
      %s78 = sphi 0, %s75
      %s79 = sphi 0, %s78
      %s95 = sphi 0, %s79
      %s103 = sphi 0, %s105
      %s106 = sphi 0, %s103
      %s107 = sphi 0, %s106
      %s123 = sphi 0, %s107
      %s133 = sphi 0, %s135
      %s136 = sphi 0, %s133
      %s137 = sphi 0, %s136
      %s153 = sphi 0, %s137
      %s161 = sphi 0, %s163
      %s164 = sphi 0, %s161
      %s165 = sphi 0, %s164
      %s181 = sphi 0, %s165
    $region4: #{multihead_self_attention.4} parent=1 // loop_header_branch
      %17 = sbr.rel (%p15) target = $region8
    $region5: #{multihead_self_attention.4} parent=1 // loop_body
      %s19 = ssub.s32 %s14, 1
      %s20 = ssub.s32 %s14, 2
      %s30 = sadd.s32 1, %s23
      %p31 = scmp.ge.s32.totalorder %s30, 4
      %s32 = scalar_select %p31, 0, %s30
      %s33 = sadd.s32 1, %s22
      %s34 = scalar_select %p31, %s33, %s22
      %p35 = scmp.ge.s32.totalorder %s34, 1
      %s36 = scalar_select %p35, 0, %s34
      %s37 = sadd.s32 1, %s21
      %s38 = scalar_select %p35, %s37, %s21
      %p39 = scmp.ge.s32.totalorder %s38, 2
      %s40 = scalar_select %p39, 0, %s38
      %s41 = ssub.s32 %s21, %s40
      %s42 = ssub.s32 %s23, %s32
      %s43 = sor.u32 %s41, %s42
      %s44 = ssub.s32 %s22, %s36
      %s45 = sor.u32 %s43, %s44
      %p46 = scmp.eq.s32.totalorder %s45, 0
      %s48 = sadd.s32 %s47, 1
      %s49 = scalar_select %p46, %s47, %s48
      %p52 = pneg %p46
      %p53 = scmp.eq.s32.totalorder %s14, 7
      %p54 = por %p52, %p53
      %p55 = scmp.ne.s32.totalorder %s47, %s50
      %p56 = scmp.eq.s32.totalorder %s14, 0
      %p57 = por %p55, %p56
      %p58 = scmp.ne.s32.totalorder %s47, %s50
      %p59 = scmp.eq.s32.totalorder %s19, 7
      %p60 = por %p58, %p59
      %p61 = scmp.ne.s32.totalorder %s50, %s51
      %p62 = scmp.eq.s32.totalorder %s19, 0
      %p63 = por %p61, %p62
      %p64 = scmp.ne.s32.totalorder %s50, %s51
      %p65 = scmp.eq.s32.totalorder %s20, 7
      %p66 = por %p64, %p65
      %p68 = scmp.ne.s32.totalorder %s51, %s67
      %p69 = scmp.eq.s32.totalorder %s20, 0
      %p70 = por %p68, %p69
      %s71 = ssub.s32 %s21, %s40
      %s72 = ssub.s32 %s23, %s32
      %s73 = sor.u32 %s71, %s72
      %p74 = scmp.eq.s32.totalorder %s73, 0
      %s76 = sadd.s32 %s75, 1
      %s77 = scalar_select %p74, %s75, %s76
      %p80 = pneg %p74
      %p81 = scmp.eq.s32.totalorder %s14, 7
      %p82 = por %p80, %p81
      %p83 = scmp.ne.s32.totalorder %s75, %s78
      %p84 = scmp.eq.s32.totalorder %s14, 0
      %p85 = por %p83, %p84
      %p86 = scmp.ne.s32.totalorder %s75, %s78
      %p87 = scmp.eq.s32.totalorder %s19, 7
      %p88 = por %p86, %p87
      %p89 = scmp.ne.s32.totalorder %s78, %s79
      %p90 = scmp.eq.s32.totalorder %s19, 0
      %p91 = por %p89, %p90
      %p92 = scmp.ne.s32.totalorder %s78, %s79
      %p93 = scmp.eq.s32.totalorder %s20, 7
      %p94 = por %p92, %p93
      %p96 = scmp.ne.s32.totalorder %s79, %s95
      %p97 = scmp.eq.s32.totalorder %s20, 0
      %p98 = por %p96, %p97
      %s99 = ssub.s32 %s21, %s40
      %s100 = ssub.s32 %s23, %s32
      %s101 = sor.u32 %s99, %s100
      %p102 = scmp.eq.s32.totalorder %s101, 0
      %s104 = sadd.s32 %s103, 1
      %s105 = scalar_select %p102, %s103, %s104
      %p108 = pneg %p102
      %p109 = scmp.eq.s32.totalorder %s14, 7
      %p110 = por %p108, %p109
      %p111 = scmp.ne.s32.totalorder %s103, %s106
      %p112 = scmp.eq.s32.totalorder %s14, 0
      %p113 = por %p111, %p112
      %p114 = scmp.ne.s32.totalorder %s103, %s106
      %p115 = scmp.eq.s32.totalorder %s19, 7
      %p116 = por %p114, %p115
      %p117 = scmp.ne.s32.totalorder %s106, %s107
      %p118 = scmp.eq.s32.totalorder %s19, 0
      %p119 = por %p117, %p118
      %p120 = scmp.ne.s32.totalorder %s106, %s107
      %p121 = scmp.eq.s32.totalorder %s20, 7
      %p122 = por %p120, %p121
      %p124 = scmp.ne.s32.totalorder %s107, %s123
      %p125 = scmp.eq.s32.totalorder %s20, 0
      %p126 = por %p124, %p125
      %s127 = ssub.s32 %s21, %s40
      %s128 = ssub.s32 %s23, %s32
      %s129 = sor.u32 %s127, %s128
      %s130 = ssub.s32 %s22, %s36
      %s131 = sor.u32 %s129, %s130
      %p132 = scmp.eq.s32.totalorder %s131, 0
      %s134 = sadd.s32 %s133, 1
      %s135 = scalar_select %p132, %s133, %s134
      %p138 = pneg %p132
      %p139 = scmp.eq.s32.totalorder %s14, 7
      %p140 = por %p138, %p139
      %p141 = scmp.ne.s32.totalorder %s133, %s136
      %p142 = scmp.eq.s32.totalorder %s14, 0
      %p143 = por %p141, %p142
      %p144 = scmp.ne.s32.totalorder %s133, %s136
      %p145 = scmp.eq.s32.totalorder %s19, 7
      %p146 = por %p144, %p145
      %p147 = scmp.ne.s32.totalorder %s136, %s137
      %p148 = scmp.eq.s32.totalorder %s19, 0
      %p149 = por %p147, %p148
      %p150 = scmp.ne.s32.totalorder %s136, %s137
      %p151 = scmp.eq.s32.totalorder %s20, 7
      %p152 = por %p150, %p151
      %p154 = scmp.ne.s32.totalorder %s137, %s153
      %p155 = scmp.eq.s32.totalorder %s20, 0
      %p156 = por %p154, %p155
      %s157 = ssub.s32 %s21, %s40
      %s158 = ssub.s32 %s22, %s36
      %s159 = sor.u32 %s157, %s158
      %p160 = scmp.eq.s32.totalorder %s159, 0
      %s162 = sadd.s32 %s161, 1
      %s163 = scalar_select %p160, %s161, %s162
      %p166 = pneg %p160
      %p167 = scmp.eq.s32.totalorder %s14, 7
      %p168 = por %p166, %p167
      %p169 = scmp.ne.s32.totalorder %s161, %s164
      %p170 = scmp.eq.s32.totalorder %s14, 0
      %p171 = por %p169, %p170
      %p172 = scmp.ne.s32.totalorder %s161, %s164
      %p173 = scmp.eq.s32.totalorder %s19, 7
      %p174 = por %p172, %p173
      %p175 = scmp.ne.s32.totalorder %s164, %s165
      %p176 = scmp.eq.s32.totalorder %s19, 0
      %p177 = por %p175, %p176
      %p178 = scmp.ne.s32.totalorder %s164, %s165
      %p179 = scmp.eq.s32.totalorder %s20, 7
      %p180 = por %p178, %p179
      %p182 = scmp.ne.s32.totalorder %s165, %s181
      %p183 = scmp.eq.s32.totalorder %s20, 0
      %p184 = por %p182, %p183
      %p185 = scmp.le.s32.totalorder 1, %s14
      %p186 = scmp.lt.s32.totalorder %s14, 9
      %p187 = pnand %p185, %p186
      %p188 = pneg %p187
      // Predicated region
      $region9: #{multihead_self_attention.4} parent=5 // pred_check
        _
      $region10: #{multihead_self_attention.4} parent=5 // pred_check_branch
        %190 = sbr.rel (%p187) target = $region12
      $region11: #{multihead_self_attention.4} parent=5 // pred_region
        %s191 = ssub.s32 %s14, 1
      $region12: #{multihead_self_attention.4} parent=5 // pred_fallthru
        _
      %p192 = scmp.lt.s32.totalorder %s14, 8
      // Predicated region
      $region13: #{multihead_self_attention.4} parent=5 // pred_check
        %p193 = pneg %p192
      $region14: #{multihead_self_attention.4} parent=5 // pred_check_branch
        %195 = sbr.rel (%p193) target = $region16
      $region15: #{multihead_self_attention.4} parent=5 // pred_region
        // Predicated region
        $region17: #{multihead_self_attention.4} parent=15 // pred_check
          %p196 = pneg %p57
        $region18: #{multihead_self_attention.4} parent=15 // pred_check_branch
          %198 = sbr.rel (%p196) target = $region20
        $region19: #{multihead_self_attention.4} parent=15 // pred_region
          %p199 = scmp.lt.s32.totalorder %s21, 1
          %s200 = scalar_select %p199, %s21, 1
          %p201 = scmp.lt.s32.totalorder %s23, 3
          %s202 = scalar_select %p201, %s23, 3
          %p203 = scmp.lt.s32.totalorder %s22, 0
          %s204 = scalar_select %p203, %s22, 0
          %s205 = sadd.s32 %s204, %s202
          %s206 = smul.addr %s200, 4
          %s207 = sadd.s32 %s205, %s206
          %s208 = smul.addr %s207, 4
          %s209 = scalar_lea.vmem %s0, %s208
        $region20: #{multihead_self_attention.4} parent=15 // pred_fallthru
          _
        // Predicated region
        $region21: #{multihead_self_attention.4} parent=15 // pred_check
          %p210 = pneg %p85
        $region22: #{multihead_self_attention.4} parent=15 // pred_check_branch
          %212 = sbr.rel (%p210) target = $region24
        $region23: #{multihead_self_attention.4} parent=15 // pred_region
          %p213 = scmp.lt.s32.totalorder %s21, 1
          %s214 = scalar_select %p213, %s21, 1
          %p215 = scmp.lt.s32.totalorder %s23, 3
          %s216 = scalar_select %p215, %s23, 3
          %s217 = smul.addr %s214, 4
          %s218 = sadd.s32 %s216, %s217
          %s219 = smul.addr %s218, 4
          %s220 = scalar_lea.vmem %s1, %s219
        $region24: #{multihead_self_attention.4} parent=15 // pred_fallthru
          _
        // Predicated region
        $region25: #{multihead_self_attention.4} parent=15 // pred_check
          %p221 = pneg %p113
        $region26: #{multihead_self_attention.4} parent=15 // pred_check_branch
          %223 = sbr.rel (%p221) target = $region28
        $region27: #{multihead_self_attention.4} parent=15 // pred_region
          %p224 = scmp.lt.s32.totalorder %s21, 1
          %s225 = scalar_select %p224, %s21, 1
          %p226 = scmp.lt.s32.totalorder %s23, 3
          %s227 = scalar_select %p226, %s23, 3
          %s228 = smul.addr %s225, 4
          %s229 = sadd.s32 %s227, %s228
          %s230 = smul.addr %s229, 4
          %s231 = scalar_lea.vmem %s2, %s230
        $region28: #{multihead_self_attention.4} parent=15 // pred_fallthru
          _
      $region16: #{multihead_self_attention.4} parent=5 // pred_fallthru
        _
      %p232 = scmp.le.s32.totalorder 1, %s14
      %p233 = scmp.lt.s32.totalorder %s14, 9
      %p234 = pnand %p232, %p233
      %p235 = pneg %p234
      // Predicated region
      $region29: #{multihead_self_attention.4} parent=5 // pred_check
        _
      $region30: #{multihead_self_attention.4} parent=5 // pred_check_branch
        %237 = sbr.rel (%p234) target = $region32
      $region31: #{multihead_self_attention.4} parent=5 // pred_region
        %s238 = ssub.s32 %s14, 1
        %p239 = scmp.lt.s32.totalorder %s24, 1
        %s240 = scalar_select %p239, %s24, 1
        %p241 = scmp.lt.s32.totalorder %s26, 3
        %s242 = scalar_select %p241, %s26, 3
        %p243 = scmp.lt.s32.totalorder %s25, 0
        %s244 = scalar_select %p243, %s25, 0
        %s245 = sadd.s32 %s244, %s242
        %s246 = smul.addr %s240, 4
        %s247 = sadd.s32 %s245, %s246
        %s248 = smul.addr %s247, 4
        %s249 = scalar_lea.vmem %s0, %s248
        %p250 = pneg %p63
        %p251 = pneg %p60
        %p252 = scmp.lt.s32.totalorder %s24, 1
        %s253 = scalar_select %p252, %s24, 1
        %p254 = scmp.lt.s32.totalorder %s26, 3
        %s255 = scalar_select %p254, %s26, 3
        %s256 = smul.addr %s253, 4
        %s257 = sadd.s32 %s255, %s256
        %s258 = smul.addr %s257, 4
        %s259 = scalar_lea.vmem %s1, %s258
        %p260 = pneg %p91
        %p261 = pneg %p88
        %p262 = scmp.lt.s32.totalorder %s24, 1
        %s263 = scalar_select %p262, %s24, 1
        %p264 = scmp.lt.s32.totalorder %s26, 3
        %s265 = scalar_select %p264, %s26, 3
        %s266 = smul.addr %s263, 4
        %s267 = sadd.s32 %s265, %s266
        %s268 = smul.addr %s267, 4
        %s269 = scalar_lea.vmem %s2, %s268
        %p270 = pneg %p119
        %p271 = pneg %p116
        %p272 = pneg %p149
        %p273 = pneg %p146
        %p274 = scmp.lt.s32.totalorder %s24, 1
        %s275 = scalar_select %p274, %s24, 1
        %p276 = scmp.lt.s32.totalorder %s26, 3
        %s277 = scalar_select %p276, %s26, 3
        %p278 = scmp.lt.s32.totalorder %s25, 0
        %s279 = scalar_select %p278, %s25, 0
        %s280 = sadd.s32 %s279, %s277
        %s281 = smul.addr %s275, 4
        %s282 = sadd.s32 %s280, %s281
        %s283 = smul.addr %s282, 4
        %s284 = scalar_lea.vmem %s3, %s283
        %p285 = pneg %p177
        %p286 = pneg %p174
        %s287 = sand.u32 %s164, 1
        %s288 = scalar_lea.sflag [#allocation4], %s287
        %s289 = sand.u32 %s164, 1
        %s290 = smul.addr %s289, 8
        %s291 = scalar_lea.vmem [#allocation3], %s290
        %p292 = scmp.lt.s32.totalorder %s24, 1
        %s293 = scalar_select %p292, %s24, 1
        %p294 = scmp.lt.s32.totalorder %s26, 3
        %s295 = scalar_select %p294, %s26, 3
        %p296 = scmp.lt.s32.totalorder %s25, 0
        %s297 = scalar_select %p296, %s25, 0
        %s298 = sadd.s32 %s297, %s295
        %s299 = smul.addr %s293, 4
        %s300 = sadd.s32 %s298, %s299
        %s301 = smul.addr %s300, 4
        %s302 = scalar_lea.vmem %s0, %s301
        %p303 = scmp.lt.s32.totalorder %s24, 1
        %s304 = scalar_select %p303, %s24, 1
        %p305 = scmp.lt.s32.totalorder %s26, 3
        %s306 = scalar_select %p305, %s26, 3
        %s307 = smul.addr %s304, 4
        %s308 = sadd.s32 %s306, %s307
        %s309 = smul.addr %s308, 4
        %s310 = scalar_lea.vmem %s1, %s309
        %p311 = scmp.lt.s32.totalorder %s24, 1
        %s312 = scalar_select %p311, %s24, 1
        %p313 = scmp.lt.s32.totalorder %s26, 3
        %s314 = scalar_select %p313, %s26, 3
        %s315 = smul.addr %s312, 4
        %s316 = sadd.s32 %s314, %s315
        %s317 = smul.addr %s316, 4
        %s318 = scalar_lea.vmem %s2, %s317
        %p319 = scmp.lt.s32.totalorder %s24, 1
        %s320 = scalar_select %p319, %s24, 1
        %p321 = scmp.lt.s32.totalorder %s26, 3
        %s322 = scalar_select %p321, %s26, 3
        %p323 = scmp.lt.s32.totalorder %s25, 0
        %s324 = scalar_select %p323, %s25, 0
        %s325 = sadd.s32 %s324, %s322
        %s326 = smul.addr %s320, 4
        %s327 = sadd.s32 %s325, %s326
        %s328 = smul.addr %s327, 4
        %s329 = scalar_lea.vmem %s3, %s328
        %p331 = scmp.eq.s32.totalorder %s26, 0
        // Predicated region
        $region33: #{multihead_self_attention.4} parent=31 // pred_check
          %p332 = pneg %p331
        $region34: #{multihead_self_attention.4} parent=31 // pred_check_branch
          %334 = sbr.rel (%p332) target = $region36
        $region35: #{multihead_self_attention.4} parent=31 // pred_region
          %vm335 = vcmask 64512
          %336 = vst.msk [vmem:[#allocation2] sm:$0xff] %vm335, 0.0
        $region36: #{multihead_self_attention.4} parent=31 // pred_fallthru
          _
        %v337 = vld [vmem:[%s302] sm:$0xf]
        %v338 = vld [vmem:[%s310] sm:$0xf]
        %v339 = vld [vmem:[%s318] sm:$0xf]
        %vm340 = vcmask 64512
        %v342 = vsel %vm340, %v337, 0
        %v345 = vsel %vm340, %v338, 0
        %347 = vmatprep.subr.bf16.mxu0 0
        %348 = vmatpush1.bf16.xpose.msra.mxu0 %v345
        %349 = vmatprep.subr.bf16.mxu0 0
        %350 = vmatpush1.bf16.xpose.msra.mxu0 0
        %351 = vmatprep.subr.bf16.mxu0 0
        %352 = vmatpush1.bf16.xpose.msra.mxu0 0
        %353 = vmatprep.subr.bf16.mxu0 0
        %354 = vmatpush1.bf16.xpose.msra.mxu0 0
        %355 = vmatprep.subr.bf16.mxu0 0
        %356 = vmatpush1.bf16.xpose.msra.mxu0 0
        %357 = vmatprep.subr.bf16.mxu0 0
        %358 = vmatpush1.bf16.xpose.msra.mxu0 0
        %359 = vmatprep.subr.bf16.mxu0 0
        %360 = vmatpush1.bf16.xpose.msra.mxu0 0
        %361 = vmatprep.subr.bf16.mxu0 0
        %362 = vmatpush1.bf16.xpose.msra.mxu0 0
        %363 = vmatprep.subr.bf16.mxu0 0
        %364 = vmatpush1.bf16.xpose.msra.mxu0 0
        %365 = vmatprep.subr.bf16.mxu0 0
        %366 = vmatpush1.bf16.xpose.msra.mxu0 0
        %367 = vmatprep.subr.bf16.mxu0 0
        %368 = vmatpush1.bf16.xpose.msra.mxu0 0
        %369 = vmatprep.subr.bf16.mxu0 0
        %370 = vmatpush1.bf16.xpose.msra.mxu0 0
        %371 = vmatprep.subr.bf16.mxu0 0
        %372 = vmatpush1.bf16.xpose.msra.mxu0 0
        %373 = vmatprep.subr.bf16.mxu0 0
        %374 = vmatpush1.bf16.xpose.msra.mxu0 0
        %375 = vmatprep.subr.bf16.mxu0 0
        %376 = vmatpush1.bf16.xpose.msra.mxu0 0
        %377 = vmatprep.subr.bf16.mxu0 0
        %378 = vmatpush1.bf16.xpose.msra.mxu0 0
        %379 = vmatprep.mubr.bf16.mxu0 0
        %380 = vmatmul.mubr.bf16.gmra.mrb[0].mxu0 %v342
        %v381 = vpop.f32.mrb[0].mxu0
        %v382 = vadd.f32 0.0, %v381
        %v383 = vpop.f32.mrb[0].mxu0
        %v384 = vpop.f32.mrb[0].mxu0
        %v385 = vpop.f32.mrb[0].mxu0
        %386 = vdwg.mxu0
        %v387 = vsel %vm340, %v382, -inf
        %388 = vmax.xlane.f32.xlu0 %v387
        %v389 = vpop.xlane.xlu0 %388
        %v390 = vsub.f32 %v382, %v389
        %v391 = vmul.f32 %v390, 1.442695
        %v392 = vpow.pop %v391
        %v393 = vsel %vm340, %v392, 0.0
        %394 = vadd.xlane.f32.xlu0 %v393
        %v395 = vpop.xlane.xlu0 %394
        %v396 = vrcp.pop %v395
        %v397 = vmul.f32 %v392, %v396
        %v398 = vpack.c.bf16 %v397, %v397
        %v400 = vsel %vm340, %v398, 0
        %vm402 = vcmask 1043456
        %v404 = vsel %vm402, %v339, 0
        %406 = vmatprep.subr.bf16.mxu0 0
        %407 = vmatpush1.bf16.msra.mxu0 %v404
        %408 = vmatprep.subr.bf16.mxu0 0
        %409 = vmatpush1.bf16.msra.mxu0 0
        %410 = vmatprep.subr.bf16.mxu0 0
        %411 = vmatpush1.bf16.msra.mxu0 0
        %412 = vmatprep.subr.bf16.mxu0 0
        %413 = vmatpush1.bf16.msra.mxu0 0
        %414 = vmatprep.subr.bf16.mxu0 0
        %415 = vmatpush1.bf16.msra.mxu0 0
        %416 = vmatprep.subr.bf16.mxu0 0
        %417 = vmatpush1.bf16.msra.mxu0 0
        %418 = vmatprep.subr.bf16.mxu0 0
        %419 = vmatpush1.bf16.msra.mxu0 0
        %420 = vmatprep.subr.bf16.mxu0 0
        %421 = vmatpush1.bf16.msra.mxu0 0
        %422 = vmatprep.subr.bf16.mxu0 0
        %423 = vmatpush1.bf16.msra.mxu0 0
        %424 = vmatprep.subr.bf16.mxu0 0
        %425 = vmatpush1.bf16.msra.mxu0 0
        %426 = vmatprep.subr.bf16.mxu0 0
        %427 = vmatpush1.bf16.msra.mxu0 0
        %428 = vmatprep.subr.bf16.mxu0 0
        %429 = vmatpush1.bf16.msra.mxu0 0
        %430 = vmatprep.subr.bf16.mxu0 0
        %431 = vmatpush1.bf16.msra.mxu0 0
        %432 = vmatprep.subr.bf16.mxu0 0
        %433 = vmatpush1.bf16.msra.mxu0 0
        %434 = vmatprep.subr.bf16.mxu0 0
        %435 = vmatpush1.bf16.msra.mxu0 0
        %436 = vmatprep.subr.bf16.mxu0 0
        %437 = vmatpush1.bf16.msra.mxu0 0
        %438 = vmatprep.mubr.bf16.mxu0 0
        %439 = vmatmul.mubr.bf16.gmra.mrb[0].mxu0 %v400
        %v440 = vpop.f32.mrb[0].mxu0
        %v441 = vadd.f32 0.0, %v440
        %v442 = vpop.f32.mrb[0].mxu0
        %v443 = vpop.f32.mrb[0].mxu0
        %v444 = vpop.f32.mrb[0].mxu0
        %445 = vdwg.mxu0
        %v446 = vpack.c.bf16 %v441, %v441
        %vm447 = vcmask 60416
        %448 = vst.msk [vmem:[%s329] sm:$0xf] %vm447, %v446
        %v449 = vld [vmem:[#allocation2] sm:$0xff]
        %v450 = vadd.f32 %v449, %v397
        %451 = vst.msk [vmem:[#allocation2] sm:$0xff] %vm340, %v450
        %p452 = scmp.eq.s32.totalorder %s26, 3
        // Predicated region
        $region37: #{multihead_self_attention.4} parent=31 // pred_check
          %p453 = pneg %p452
        $region38: #{multihead_self_attention.4} parent=31 // pred_check_branch
          %455 = sbr.rel (%p453) target = $region40
        $region39: #{multihead_self_attention.4} parent=31 // pred_region
          %v456 = vld [vmem:[#allocation2] sm:$0xff]
          %v457 = vmul.f32 %v456, 0.25
          %458 = vst.msk [vmem:[%s291] sm:$0xff] %vm340, %v457
        $region40: #{multihead_self_attention.4} parent=31 // pred_fallthru
          _
        %p459 = scmp.lt.s32.totalorder %s24, 1
        %s460 = scalar_select %p459, %s24, 1
        %p461 = scmp.lt.s32.totalorder %s26, 3
        %s462 = scalar_select %p461, %s26, 3
        %p463 = scmp.lt.s32.totalorder %s25, 0
        %s464 = scalar_select %p463, %s25, 0
        %s465 = sadd.s32 %s464, %s462
        %s466 = smul.addr %s460, 4
        %s467 = sadd.s32 %s465, %s466
        %s468 = smul.addr %s467, 4
        %s469 = scalar_lea.vmem %s3, %s468
        %s470 = sand.u32 %s164, 1
        %s471 = scalar_lea.sflag [#allocation4], %s470
        %s472 = sand.u32 %s164, 1
        %s473 = smul.addr %s472, 8
        %s474 = scalar_lea.vmem [#allocation3], %s473
        // Predicated region
        $region41: #{multihead_self_attention.4} parent=31 // pred_check
          %p475 = pneg %p146
        $region42: #{multihead_self_attention.4} parent=31 // pred_check_branch
          %477 = sbr.rel (%p475) target = $region44
        $region43: #{multihead_self_attention.4} parent=31 // pred_region
          _
        $region44: #{multihead_self_attention.4} parent=31 // pred_fallthru
          _
        // Predicated region
        $region45: #{multihead_self_attention.4} parent=31 // pred_check
          %p478 = pneg %p174
        $region46: #{multihead_self_attention.4} parent=31 // pred_check_branch
          %480 = sbr.rel (%p478) target = $region48
        $region47: #{multihead_self_attention.4} parent=31 // pred_region
          %s482 = ssub.s32 128, 128
          %483 = vsyncadd %s471, %s482
          %s484 = sadd.s32 %s25, %s24
          %s485 = smul.addr %s484, 128
          %s486 = scalar_lea.hbm %s4, %s485
          %s488 = sshll.u32 %s474, 4
          %s489 = int_to_ptr.vmem [resolvable:$true] %s488
          %491 = dma.vmem_to_hbm [thread:$0]  %s489, 128, %s486, %s471
        $region48: #{multihead_self_attention.4} parent=31 // pred_fallthru
          _
      $region32: #{multihead_self_attention.4} parent=5 // pred_fallthru
        _
      %p492 = scmp.le.s32.totalorder 2, %s14
      // Predicated region
      $region49: #{multihead_self_attention.4} parent=5 // pred_check
        %p493 = pneg %p492
      $region50: #{multihead_self_attention.4} parent=5 // pred_check_branch
        %495 = sbr.rel (%p493) target = $region52
      $region51: #{multihead_self_attention.4} parent=5 // pred_region
        %s496 = ssub.s32 %s14, 2
        // Predicated region
        $region53: #{multihead_self_attention.4} parent=51 // pred_check
          %p497 = pneg %p152
        $region54: #{multihead_self_attention.4} parent=51 // pred_check_branch
          %499 = sbr.rel (%p497) target = $region56
        $region55: #{multihead_self_attention.4} parent=51 // pred_region
          %p500 = scmp.lt.s32.totalorder %s27, 1
          %s501 = scalar_select %p500, %s27, 1
          %p502 = scmp.lt.s32.totalorder %s29, 3
          %s503 = scalar_select %p502, %s29, 3
          %p504 = scmp.lt.s32.totalorder %s28, 0
          %s505 = scalar_select %p504, %s28, 0
          %s506 = sadd.s32 %s505, %s503
          %s507 = smul.addr %s501, 4
          %s508 = sadd.s32 %s506, %s507
          %s509 = smul.addr %s508, 4
          %s510 = scalar_lea.vmem %s3, %s509
        $region56: #{multihead_self_attention.4} parent=51 // pred_fallthru
          _
        // Predicated region
        $region57: #{multihead_self_attention.4} parent=51 // pred_check
          %p511 = pneg %p180
        $region58: #{multihead_self_attention.4} parent=51 // pred_check_branch
          %513 = sbr.rel (%p511) target = $region60
        $region59: #{multihead_self_attention.4} parent=51 // pred_region
          %s514 = sand.u32 %s165, 1
          %s515 = scalar_lea.sflag [#allocation4], %s514
          %s516 = sand.u32 %s165, 1
          %s517 = smul.addr %s516, 8
          %s518 = scalar_lea.vmem [#allocation3], %s517
          %519 = dma.done %s515, 128
        $region60: #{multihead_self_attention.4} parent=51 // pred_fallthru
          _
      $region52: #{multihead_self_attention.4} parent=5 // pred_fallthru
        _
    $region6: #{multihead_self_attention.4} parent=1 // loop_footer
      %s18 = sadd.s32 1, %s14
    $region7: #{multihead_self_attention.4} parent=1 // loop_footer_branch
      %13 = sbr.rel target = $region3
    $region8: #{multihead_self_attention.4} parent=1 // loop_exit
      _
    %520 = vsyncpa [#allocation4], 1
    %s521 = scalar_lea.sflag [#allocation4], 1
    %522 = vsyncpa %s521, 1

// kernel: multihead_self_attention.3
$region0: #{multihead_self_attention.3}
  #allocation0 [shape = 'u32[]', space=smem, size = 0x4, offset = 0x4, fixed_abs, tag = 'smem constant byte address 0x4 - core index']
  #allocation1 [shape = 'u32[144,128]{1,0:T(1,128)}', space=vmem, size = 0x12000, scoped, tag = 'internal scratch']
  #allocation2 [shape = 'f32[16,128]{1,0:T(8,128)}', space=vmem, size = 0x2000, scoped, tag = 'scratch operand']
  %s0 = inlined_call_operand.vmem [shape: bf16[16,128], index: 0, kind: input, shape index: {}]
  %s1 = inlined_call_operand.vmem [shape: bf16[128,128], index: 1, kind: input, shape index: {}]
  %s2 = inlined_call_operand.vmem [shape: f32[1,128], index: 2, kind: input, shape index: {}]
  %s3 = inlined_call_operand.vmem [shape: bf16[16,128], index: 3, kind: output, shape index: {}]
  %s4 = sld [smem:[#allocation0]]
  $region30: #{multihead_self_attention.3} parent=0
    _
  %s6 = ssub.s32 1, %s4
  %s7 = scalar_select 0, %s6, %s4
  // Predicated region
  $region2: #{multihead_self_attention.3} parent=0 // pred_check
    _
  $region3: #{multihead_self_attention.3} parent=0 // pred_check_branch
    %9 = sbr.rel (0) target = $region5
  $region4: #{multihead_self_attention.3} parent=0 // pred_region
    _
  $region5: #{multihead_self_attention.3} parent=0 // pred_fallthru
    _
  // Predicated region
  $region6: #{multihead_self_attention.3} parent=0 // pred_check
    _
  $region7: #{multihead_self_attention.3} parent=0 // pred_check_branch
    %11 = sbr.rel (0) target = $region9
  $region8: #{multihead_self_attention.3} parent=0 // pred_region
    _
  $region9: #{multihead_self_attention.3} parent=0 // pred_fallthru
    _
  // Predicated region
  $region10: #{multihead_self_attention.3} parent=0 // pred_check
    _
  $region11: #{multihead_self_attention.3} parent=0 // pred_check_branch
    %13 = sbr.rel (0) target = $region13
  $region12: #{multihead_self_attention.3} parent=0 // pred_region
    _
  $region13: #{multihead_self_attention.3} parent=0 // pred_fallthru
    _
  %p15 = scmp.eq.s32.totalorder 0, 0
  // Predicated region
  $region14: #{multihead_self_attention.3} parent=0 // pred_check
    %p16 = pneg %p15
  $region15: #{multihead_self_attention.3} parent=0 // pred_check_branch
    %18 = sbr.rel (%p16) target = $region17
  $region16: #{multihead_self_attention.3} parent=0 // pred_region
    %19 = vst [vmem:[#allocation2] sm:$0xff] 0.0
    %20 = vst [vmem:[#allocation2 + $0x8] sm:$0xff] 0.0
  $region17: #{multihead_self_attention.3} parent=0 // pred_fallthru
    _
  %v21 = vld [vmem:[#allocation2] sm:$0xff]
  %v22 = vld [vmem:[#allocation2 + $0x8] sm:$0xff]
  %v23 = vld [vmem:[%s0] sm:$0xf]
  %v24 = vld [vmem:[%s0 + $0x4] sm:$0xf]
  %v25 = vld [vmem:[%s1] sm:$0xf]
  %v26 = vld [vmem:[%s1 + $0x4] sm:$0xf]
  %v27 = vld [vmem:[%s1 + $0x8] sm:$0xf]
  %v28 = vld [vmem:[%s1 + $0xc] sm:$0xf]
  %v29 = vld [vmem:[%s1 + $0x10] sm:$0xf]
  %v30 = vld [vmem:[%s1 + $0x14] sm:$0xf]
  %v31 = vld [vmem:[%s1 + $0x18] sm:$0xf]
  %v32 = vld [vmem:[%s1 + $0x1c] sm:$0xf]
  %v33 = vld [vmem:[%s1 + $0x20] sm:$0xf]
  %v34 = vld [vmem:[%s1 + $0x24] sm:$0xf]
  %v35 = vld [vmem:[%s1 + $0x28] sm:$0xf]
  %v36 = vld [vmem:[%s1 + $0x2c] sm:$0xf]
  %v37 = vld [vmem:[%s1 + $0x30] sm:$0xf]
  %v38 = vld [vmem:[%s1 + $0x34] sm:$0xf]
  %v39 = vld [vmem:[%s1 + $0x38] sm:$0xf]
  %v40 = vld [vmem:[%s1 + $0x3c] sm:$0xf]
  %v43 = vunpack.c.l.b16 %v23
  %v44 = vunpack.c.l.b16 %v24
  %v45 = vpack.c.b16 %v44, %v43
  %v63 = vunpack.c.l.b16 %v25
  %v64 = vunpack.c.l.b16 %v26
  %v65 = vunpack.c.l.b16 %v27
  %v66 = vunpack.c.l.b16 %v28
  %v67 = vunpack.c.l.b16 %v29
  %v68 = vunpack.c.l.b16 %v30
  %v69 = vunpack.c.l.b16 %v31
  %v70 = vunpack.c.l.b16 %v32
  %v71 = vunpack.c.l.b16 %v33
  %v72 = vunpack.c.l.b16 %v34
  %v73 = vunpack.c.l.b16 %v35
  %v74 = vunpack.c.l.b16 %v36
  %v75 = vunpack.c.l.b16 %v37
  %v76 = vunpack.c.l.b16 %v38
  %v77 = vunpack.c.l.b16 %v39
  %v78 = vunpack.c.l.b16 %v40
  %v79 = vpack.c.b16 %v64, %v63
  %v80 = vpack.c.b16 %v66, %v65
  %v81 = vpack.c.b16 %v68, %v67
  %v82 = vpack.c.b16 %v70, %v69
  %v83 = vpack.c.b16 %v72, %v71
  %v84 = vpack.c.b16 %v74, %v73
  %v85 = vpack.c.b16 %v76, %v75
  %v86 = vpack.c.b16 %v78, %v77
  %95 = vmatprep.subr.bf16.mxu0 0
  %96 = vmatpush1.bf16.xpose.msra.mxu0 %v79
  %97 = vmatprep.subr.bf16.mxu0 0
  %98 = vmatpush1.bf16.xpose.msra.mxu0 %v80
  %99 = vmatprep.subr.bf16.mxu0 0
  %100 = vmatpush1.bf16.xpose.msra.mxu0 %v81
  %101 = vmatprep.subr.bf16.mxu0 0
  %102 = vmatpush1.bf16.xpose.msra.mxu0 %v82
  %103 = vmatprep.subr.bf16.mxu0 0
  %104 = vmatpush1.bf16.xpose.msra.mxu0 %v83
  %105 = vmatprep.subr.bf16.mxu0 0
  %106 = vmatpush1.bf16.xpose.msra.mxu0 %v84
  %107 = vmatprep.subr.bf16.mxu0 0
  %108 = vmatpush1.bf16.xpose.msra.mxu0 %v85
  %109 = vmatprep.subr.bf16.mxu0 0
  %110 = vmatpush1.bf16.xpose.msra.mxu0 %v86
  %111 = vmatprep.subr.bf16.mxu0 0
  %112 = vmatpush1.bf16.xpose.msra.mxu0 0
  %113 = vmatprep.subr.bf16.mxu0 0
  %114 = vmatpush1.bf16.xpose.msra.mxu0 0
  %115 = vmatprep.subr.bf16.mxu0 0
  %116 = vmatpush1.bf16.xpose.msra.mxu0 0
  %117 = vmatprep.subr.bf16.mxu0 0
  %118 = vmatpush1.bf16.xpose.msra.mxu0 0
  %119 = vmatprep.subr.bf16.mxu0 0
  %120 = vmatpush1.bf16.xpose.msra.mxu0 0
  %121 = vmatprep.subr.bf16.mxu0 0
  %122 = vmatpush1.bf16.xpose.msra.mxu0 0
  %123 = vmatprep.subr.bf16.mxu0 0
  %124 = vmatpush1.bf16.xpose.msra.mxu0 0
  %125 = vmatprep.subr.bf16.mxu0 0
  %126 = vmatpush1.bf16.xpose.msra.mxu0 0
  %127 = vmatprep.mubr.bf16.mxu0 0
  %128 = vmatmul.mubr.bf16.gmra.mrb[0].mxu0 %v45
  %v129 = vpop.f32.mrb[0].mxu0
  %v130 = vadd.f32 0.0, %v129
  %v131 = vpop.f32.mrb[0].mxu0
  %v132 = vpop.f32.mrb[0].mxu0
  %v133 = vadd.f32 0.0, %v132
  %v134 = vpop.f32.mrb[0].mxu0
  %135 = vdwg.mxu0
  %v136 = vadd.f32 %v21, %v130
  %v137 = vadd.f32 %v22, %v133
  %138 = vst [vmem:[#allocation2] sm:$0xff] %v136
  %139 = vst [vmem:[#allocation2 + $0x8] sm:$0xff] %v137
  // Predicated region
  $region18: #{multihead_self_attention.3} parent=0 // pred_check
    %p140 = pneg %p15
  $region19: #{multihead_self_attention.3} parent=0 // pred_check_branch
    %142 = sbr.rel (%p140) target = $region21
  $region20: #{multihead_self_attention.3} parent=0 // pred_region
    %v143 = vld [vmem:[#allocation2] sm:$0xff]
    %v144 = vld [vmem:[#allocation2 + $0x8] sm:$0xff]
    %v145 = vld [vmem:[%s2] sm:$0x1]
    %v147 = vlaneseq
    %v148 = vshrl.u32 %v147, 7
    %v149 = vsub.s32 0, %v148
    %v150 = vrot.slane %v145, %v149
    %v152 = vadd.f32 %v143, %v150
    %v153 = vadd.f32 %v144, %v150
    %v154 = vpack.c.bf16 %v153, %v152
    %v156 = vunpack.c.l.b16 %v154
    %v157 = vunpack.c.h.b16 %v154
    %v158 = vpack.c.b16 %v156, %v156
    %v159 = vpack.c.b16 %v157, %v157
    %162 = vst [vmem:[%s3] sm:$0xf] %v158
    %163 = vst [vmem:[%s3 + $0x4] sm:$0xf] %v159
  $region21: #{multihead_self_attention.3} parent=0 // pred_fallthru
    _
  // Predicated region
  $region22: #{multihead_self_attention.3} parent=0 // pred_check
    _
  $region23: #{multihead_self_attention.3} parent=0 // pred_check_branch
    %165 = sbr.rel (0) target = $region25
  $region24: #{multihead_self_attention.3} parent=0 // pred_region
    _
  $region25: #{multihead_self_attention.3} parent=0 // pred_fallthru
    _
  // Predicated region
  $region26: #{multihead_self_attention.3} parent=0 // pred_check
    _
  $region27: #{multihead_self_attention.3} parent=0 // pred_check_branch
    %167 = sbr.rel (0) target = $region29
  $region28: #{multihead_self_attention.3} parent=0 // pred_region
    _
  $region29: #{multihead_self_attention.3} parent=0 // pred_fallthru
    _

// kernel: multihead_self_attention.5
$region0: #{multihead_self_attention.5}
  #allocation0 [shape = 'u32[]', space=smem, size = 0x4, offset = 0x4, fixed_abs, tag = 'smem constant byte address 0x4 - core index']
  #allocation1 [shape = 'u32[144,128]{1,0:T(1,128)}', space=vmem, size = 0x12000, scoped, tag = 'internal scratch']
  #allocation2 [shape = 'f32[16,128]{1,0:T(8,128)}', space=vmem, size = 0x2000, scoped, tag = 'scratch operand']
  %s0 = inlined_call_operand.vmem [shape: bf16[16,128], index: 0, kind: input, shape index: {}]
  %s1 = inlined_call_operand.vmem [shape: bf16[128,128], index: 1, kind: input, shape index: {}]
  %s2 = inlined_call_operand.vmem [shape: f32[1,128], index: 2, kind: input, shape index: {}]
  %s3 = inlined_call_operand.vmem [shape: f32[16,128], index: 3, kind: output, shape index: {}]
  %s4 = sld [smem:[#allocation0]]
  $region30: #{multihead_self_attention.5} parent=0
    _
  %s6 = ssub.s32 1, %s4
  %s7 = scalar_select 0, %s6, %s4
  // Predicated region
  $region2: #{multihead_self_attention.5} parent=0 // pred_check
    _
  $region3: #{multihead_self_attention.5} parent=0 // pred_check_branch
    %9 = sbr.rel (0) target = $region5
  $region4: #{multihead_self_attention.5} parent=0 // pred_region
    _
  $region5: #{multihead_self_attention.5} parent=0 // pred_fallthru
    _
  // Predicated region
  $region6: #{multihead_self_attention.5} parent=0 // pred_check
    _
  $region7: #{multihead_self_attention.5} parent=0 // pred_check_branch
    %11 = sbr.rel (0) target = $region9
  $region8: #{multihead_self_attention.5} parent=0 // pred_region
    _
  $region9: #{multihead_self_attention.5} parent=0 // pred_fallthru
    _
  // Predicated region
  $region10: #{multihead_self_attention.5} parent=0 // pred_check
    _
  $region11: #{multihead_self_attention.5} parent=0 // pred_check_branch
    %13 = sbr.rel (0) target = $region13
  $region12: #{multihead_self_attention.5} parent=0 // pred_region
    _
  $region13: #{multihead_self_attention.5} parent=0 // pred_fallthru
    _
  %p15 = scmp.eq.s32.totalorder 0, 0
  // Predicated region
  $region14: #{multihead_self_attention.5} parent=0 // pred_check
    %p16 = pneg %p15
  $region15: #{multihead_self_attention.5} parent=0 // pred_check_branch
    %18 = sbr.rel (%p16) target = $region17
  $region16: #{multihead_self_attention.5} parent=0 // pred_region
    %19 = vst [vmem:[#allocation2] sm:$0xff] 0.0
    %20 = vst [vmem:[#allocation2 + $0x8] sm:$0xff] 0.0
  $region17: #{multihead_self_attention.5} parent=0 // pred_fallthru
    _
  %v21 = vld [vmem:[#allocation2] sm:$0xff]
  %v22 = vld [vmem:[#allocation2 + $0x8] sm:$0xff]
  %v23 = vld [vmem:[%s0] sm:$0xf]
  %v24 = vld [vmem:[%s0 + $0x4] sm:$0xf]
  %v25 = vld [vmem:[%s1] sm:$0xf]
  %v26 = vld [vmem:[%s1 + $0x4] sm:$0xf]
  %v27 = vld [vmem:[%s1 + $0x8] sm:$0xf]
  %v28 = vld [vmem:[%s1 + $0xc] sm:$0xf]
  %v29 = vld [vmem:[%s1 + $0x10] sm:$0xf]
  %v30 = vld [vmem:[%s1 + $0x14] sm:$0xf]
  %v31 = vld [vmem:[%s1 + $0x18] sm:$0xf]
  %v32 = vld [vmem:[%s1 + $0x1c] sm:$0xf]
  %v33 = vld [vmem:[%s1 + $0x20] sm:$0xf]
  %v34 = vld [vmem:[%s1 + $0x24] sm:$0xf]
  %v35 = vld [vmem:[%s1 + $0x28] sm:$0xf]
  %v36 = vld [vmem:[%s1 + $0x2c] sm:$0xf]
  %v37 = vld [vmem:[%s1 + $0x30] sm:$0xf]
  %v38 = vld [vmem:[%s1 + $0x34] sm:$0xf]
  %v39 = vld [vmem:[%s1 + $0x38] sm:$0xf]
  %v40 = vld [vmem:[%s1 + $0x3c] sm:$0xf]
  %v43 = vunpack.c.l.b16 %v23
  %v44 = vunpack.c.l.b16 %v24
  %v45 = vpack.c.b16 %v44, %v43
  %v63 = vunpack.c.l.b16 %v25
  %v64 = vunpack.c.l.b16 %v26
  %v65 = vunpack.c.l.b16 %v27
  %v66 = vunpack.c.l.b16 %v28
  %v67 = vunpack.c.l.b16 %v29
  %v68 = vunpack.c.l.b16 %v30
  %v69 = vunpack.c.l.b16 %v31
  %v70 = vunpack.c.l.b16 %v32
  %v71 = vunpack.c.l.b16 %v33
  %v72 = vunpack.c.l.b16 %v34
  %v73 = vunpack.c.l.b16 %v35
  %v74 = vunpack.c.l.b16 %v36
  %v75 = vunpack.c.l.b16 %v37
  %v76 = vunpack.c.l.b16 %v38
  %v77 = vunpack.c.l.b16 %v39
  %v78 = vunpack.c.l.b16 %v40
  %v79 = vpack.c.b16 %v64, %v63
  %v80 = vpack.c.b16 %v66, %v65
  %v81 = vpack.c.b16 %v68, %v67
  %v82 = vpack.c.b16 %v70, %v69
  %v83 = vpack.c.b16 %v72, %v71
  %v84 = vpack.c.b16 %v74, %v73
  %v85 = vpack.c.b16 %v76, %v75
  %v86 = vpack.c.b16 %v78, %v77
  %95 = vmatprep.subr.bf16.mxu0 0
  %96 = vmatpush1.bf16.xpose.msra.mxu0 %v79
  %97 = vmatprep.subr.bf16.mxu0 0
  %98 = vmatpush1.bf16.xpose.msra.mxu0 %v80
  %99 = vmatprep.subr.bf16.mxu0 0
  %100 = vmatpush1.bf16.xpose.msra.mxu0 %v81
  %101 = vmatprep.subr.bf16.mxu0 0
  %102 = vmatpush1.bf16.xpose.msra.mxu0 %v82
  %103 = vmatprep.subr.bf16.mxu0 0
  %104 = vmatpush1.bf16.xpose.msra.mxu0 %v83
  %105 = vmatprep.subr.bf16.mxu0 0
  %106 = vmatpush1.bf16.xpose.msra.mxu0 %v84
  %107 = vmatprep.subr.bf16.mxu0 0
  %108 = vmatpush1.bf16.xpose.msra.mxu0 %v85
  %109 = vmatprep.subr.bf16.mxu0 0
  %110 = vmatpush1.bf16.xpose.msra.mxu0 %v86
  %111 = vmatprep.subr.bf16.mxu0 0
  %112 = vmatpush1.bf16.xpose.msra.mxu0 0
  %113 = vmatprep.subr.bf16.mxu0 0
  %114 = vmatpush1.bf16.xpose.msra.mxu0 0
  %115 = vmatprep.subr.bf16.mxu0 0
  %116 = vmatpush1.bf16.xpose.msra.mxu0 0
  %117 = vmatprep.subr.bf16.mxu0 0
  %118 = vmatpush1.bf16.xpose.msra.mxu0 0
  %119 = vmatprep.subr.bf16.mxu0 0
  %120 = vmatpush1.bf16.xpose.msra.mxu0 0
  %121 = vmatprep.subr.bf16.mxu0 0
  %122 = vmatpush1.bf16.xpose.msra.mxu0 0
  %123 = vmatprep.subr.bf16.mxu0 0
  %124 = vmatpush1.bf16.xpose.msra.mxu0 0
  %125 = vmatprep.subr.bf16.mxu0 0
  %126 = vmatpush1.bf16.xpose.msra.mxu0 0
  %127 = vmatprep.mubr.bf16.mxu0 0
  %128 = vmatmul.mubr.bf16.gmra.mrb[0].mxu0 %v45
  %v129 = vpop.f32.mrb[0].mxu0
  %v130 = vadd.f32 0.0, %v129
  %v131 = vpop.f32.mrb[0].mxu0
  %v132 = vpop.f32.mrb[0].mxu0
  %v133 = vadd.f32 0.0, %v132
  %v134 = vpop.f32.mrb[0].mxu0
  %135 = vdwg.mxu0
  %v136 = vadd.f32 %v21, %v130
  %v137 = vadd.f32 %v22, %v133
  %138 = vst [vmem:[#allocation2] sm:$0xff] %v136
  %139 = vst [vmem:[#allocation2 + $0x8] sm:$0xff] %v137
  // Predicated region
  $region18: #{multihead_self_attention.5} parent=0 // pred_check
    %p140 = pneg %p15
  $region19: #{multihead_self_attention.5} parent=0 // pred_check_branch
    %142 = sbr.rel (%p140) target = $region21
  $region20: #{multihead_self_attention.5} parent=0 // pred_region
    %v143 = vld [vmem:[#allocation2] sm:$0xff]
    %v144 = vld [vmem:[#allocation2 + $0x8] sm:$0xff]
    %v145 = vld [vmem:[%s2] sm:$0x1]
    %v147 = vlaneseq
    %v148 = vshrl.u32 %v147, 7
    %v149 = vsub.s32 0, %v148
    %v150 = vrot.slane %v145, %v149
    %v152 = vadd.f32 %v143, %v150
    %v153 = vadd.f32 %v144, %v150
    %154 = vst [vmem:[%s3] sm:$0xff] %v152
    %155 = vst [vmem:[%s3 + $0x8] sm:$0xff] %v153
  $region21: #{multihead_self_attention.5} parent=0 // pred_fallthru
    _
  // Predicated region
  $region22: #{multihead_self_attention.5} parent=0 // pred_check
    _
  $region23: #{multihead_self_attention.5} parent=0 // pred_check_branch
    %157 = sbr.rel (0) target = $region25
  $region24: #{multihead_self_attention.5} parent=0 // pred_region
    _
  $region25: #{multihead_self_attention.5} parent=0 // pred_fallthru
    _
  // Predicated region
  $region26: #{multihead_self_attention.5} parent=0 // pred_check
    _
  $region27: #{multihead_self_attention.5} parent=0 // pred_check_branch
    %159 = sbr.rel (0) target = $region29
  $region28: #{multihead_self_attention.5} parent=0 // pred_region
    _
  $region29: #{multihead_self_attention.5} parent=0 // pred_fallthru
    _

</llo_original>
